<compile_context>
chip_gen: v6e
topology: v6e:2x2x1
jax: 0.10.0
libtpu: 0.0.40
codegen_flags: <defaults>
</compile_context>

<pallas_src>
import math

import jax
import jax.numpy as jnp
from jax.experimental import pallas as pl
from jax.experimental.pallas import tpu as pltpu


STANDARD_CONV = (
    {"channel_num": 32, "kernel_size": 8, "stride": 4, "padding": 0},
    {"channel_num": 64, "kernel_size": 4, "stride": 2, "padding": 0},
    {"channel_num": 64, "kernel_size": 3, "stride": 1, "padding": 0},
)

_LANE = 128
_SUBLANE = 8


def _round_up(x, m):
    return (x + m - 1) // m * m


# ----------------------------------------------------------------------------
# Pallas kernel: fused GEMM + bias (hot path of every conv layer)
# ----------------------------------------------------------------------------
def _matmul_bias_kernel(p_ref, w_ref, b_ref, o_ref):
    # p_ref: (TM, K) im2col patch tile, w_ref: (K, N) weights, b_ref: (1, N)
    # N is a multiple of 128 -> lane-dense, unmasked stores.
    o_ref[...] = (
        jnp.dot(p_ref[...], w_ref[...], preferred_element_type=jnp.float32)
        + b_ref[...]
    )


def _gemm_bias(patches, w2d, bias2d, *, tm_max=512):
    """(M, K) @ (K, N) + bias, K and N already multiples of 128."""
    M, K = patches.shape
    _, N = w2d.shape

    tm = min(tm_max, _round_up(M, _SUBLANE))
    # Budget: 2 pipeline buffers of the (tm, K) patch tile must stay well
    # under scoped VMEM (32 MiB default; 64 MiB physical on v7x).
    while tm > _SUBLANE and 2 * tm * K * 4 > 24 * 1024 * 1024:
        tm //= 2
    tm = max(_SUBLANE, _round_up(tm, _SUBLANE))

    m_pad = _round_up(M, tm)
    if m_pad != M:
        patches = jnp.pad(patches, ((0, m_pad - M), (0, 0)))

    out = pl.pallas_call(
        _matmul_bias_kernel,
        out_shape=jax.ShapeDtypeStruct((m_pad, N), jnp.float32),
        grid=(m_pad // tm,),
        in_specs=[
            pl.BlockSpec((tm, K), lambda i: (i, 0)),
            pl.BlockSpec((K, N), lambda i: (0, 0)),
            pl.BlockSpec((1, N), lambda i: (0, 0)),
        ],
        out_specs=pl.BlockSpec((tm, N), lambda i: (i, 0)),
        compiler_params=pltpu.CompilerParams(
            dimension_semantics=("parallel",),
            vmem_limit_bytes=64 * 1024 * 1024,
        ),
    )(patches, w2d, bias2d)
    return out[:M] if m_pad != M else out


# ----------------------------------------------------------------------------
# Glue: NHWC im2col (static strided slices), conv wrapper
# ----------------------------------------------------------------------------
def _im2col_nhwc(x, kh, kw, stride):
    # x: (B, H, W, C) -> patches (B*OH*OW, KH*KW*C), column order (kh, kw, c)
    # (matches weight.transpose(2, 3, 1, 0).reshape(KH*KW*C, OC)).
    B, H, W, C = x.shape
    OH = (H - kh) // stride + 1
    OW = (W - kw) // stride + 1
    cols = []
    for i in range(kh):
        for j in range(kw):
            cols.append(
                x[:, i : i + stride * OH : stride, j : j + stride * OW : stride, :]
            )  # (B, OH, OW, C)
    stacked = jnp.stack(cols, axis=3)  # (B, OH, OW, KH*KW, C)
    patches = stacked.reshape(B * OH * OW, kh * kw * C)
    return patches, OH, OW


def _conv2d_nhwc(x, w2d_pad, b2d_pad, kh, kw, stride, oc):
    """NHWC in -> NHWC out, Pallas GEMM core. w2d_pad: (K_pad, 128-mult)."""
    B, H, W, C = x.shape
    patches, OH, OW = _im2col_nhwc(x, kh, kw, stride)
    k = kh * kw * C
    k_pad = w2d_pad.shape[0]
    if k_pad != k:
        patches = jnp.pad(patches, ((0, 0), (0, k_pad - k)))
    out = _gemm_bias(patches, w2d_pad, b2d_pad)      # (B*OH*OW, OC_pad)
    out = out[:, :oc]
    return out.reshape(B, OH, OW, oc)


# ----------------------------------------------------------------------------
class BaseEncoderPallas:
    def __init__(self, x_dim, z_dim, key):
        self.x_dim = tuple(x_dim)  # (C, H, W)
        self.z_dim = z_dim
        print("Encoder has dimensions:", x_dim, "->", z_dim, "Device: tpu")

        # Deterministic parameter init (PyTorch-style uniform(-1/sqrt(fan_in), +)).
        self.torch_params = []  # (w OIHW, b, stride) for reference checks
        self.layers = []        # pre-transposed / pre-padded GEMM operands
        in_ch = self.x_dim[0]
        for i, cfg in enumerate(STANDARD_CONV):
            oc, k, s = cfg["channel_num"], cfg["kernel_size"], cfg["stride"]
            fan_in = in_ch * k * k
            bound = 1.0 / math.sqrt(fan_in)
            kw_, kb_ = jax.random.split(jax.random.fold_in(key, i))
            w = jax.random.uniform(kw_, (oc, in_ch, k, k), jnp.float32, -bound, bound)
            b = jax.random.uniform(kb_, (oc,), jnp.float32, -bound, bound)
            self.torch_params.append((w, b, s))

            # (OC, C, KH, KW) -> (KH, KW, C, OC) -> (K, OC); pad K to a 128
            # multiple and OC to 128 (zero pads) so the kernel is lane-dense.
            k_dim = in_ch * k * k
            k_pad = _round_up(k_dim, _LANE)
            n_pad = _round_up(oc, _LANE)
            w2d = w.transpose(2, 3, 1, 0).reshape(k_dim, oc)
            w2d = jnp.pad(w2d, ((0, k_pad - k_dim), (0, n_pad - oc)))
            b2d = jnp.pad(b.reshape(1, oc), ((0, 0), (0, n_pad - oc)))
            self.layers.append(dict(w2d=w2d, b2d=b2d, kh=k, kw=k, stride=s, oc=oc))
            in_ch = oc

        self._forward = jax.jit(self._forward_impl)

    # -- semantics of BaseEncoder.apply_tensor_constraints --------------------
    def apply_tensor_constraints(self, x):
        expected_dims = len(self.x_dim)
        if x.ndim == expected_dims:
            x = x[None, ...]  # unsqueeze(0)
        elif x.ndim != expected_dims + 1:
            raise ValueError(
                "Encoder input tensor should be "
                + str(expected_dims)
                + "D (single example) or "
                + str(expected_dims + 1)
                + "D (batch)."
            )
        assert tuple(x.shape[-expected_dims:]) == self.x_dim
        return x

    def get_z_dim(self):
        return self.z_dim

    def get_x_dim(self):
        return self.x_dim

    # -- forward ---------------------------------------------------------------
    def _forward_impl(self, x):
        # NCHW (PyTorch convention) -> NHWC once; channels ride the lane dim.
        x = x.transpose(0, 2, 3, 1)
        for layer in self.layers:
            x = _conv2d_nhwc(
                x, layer["w2d"], layer["b2d"],
                layer["kh"], layer["kw"], layer["stride"], layer["oc"],
            )
        # Back to NCHW on the (tiny) final activation so Flatten ordering
        # matches PyTorch's x.view(B, -1) on an NCHW tensor.
        x = x.transpose(0, 3, 1, 2)
        return x.reshape(x.shape[0], -1)

    def __call__(self, x):
        x = self.apply_tensor_constraints(x)
        return self._forward(x)


# ----------------------------------------------------------------------------
if __name__ == "__main__":
    # NOTE: BaseEncoder declares no activations between convs (those live in
    # subclasses), so none are applied here.
    key = jax.random.PRNGKey(0)
    k_param, k_x = jax.random.split(key)

    # 36x36 is the minimum spatial size that survives the 8/4 -> 4/2 -> 3/1
    # VALID conv stack (36 -> 8 -> 3 -> 1).
    B, C, H, W = 2, 4, 36, 36
    x_dim = (C, H, W)
    enc = BaseEncoderPallas(x_dim, z_dim=(64,), key=k_param)

    x = jax.random.normal(k_x, (B, C, H, W), dtype=jnp.float32)
    z = enc(x)
    jax.block_until_ready(z)

    # Reference check against XLA conv (NCHW) for sanity.
    ref = x
    for w, b, s in enc.torch_params:
        ref = jax.lax.conv_general_dilated(
            ref, w, (s, s), "VALID", dimension_numbers=("NCHW", "OIHW", "NCHW")
        ) + b.reshape(1, -1, 1, 1)
    ref = ref.reshape(ref.shape[0], -1)
    assert z.shape == (B, 64), z.shape
    assert jnp.allclose(z, ref, atol=1e-4, rtol=1e-4), float(
        jnp.max(jnp.abs(z - ref))
    )

    print("KERNEL_OK")
</pallas_src>

<mosaic_0001>
module attributes {stable_mosaic.version = 11 : i64} {
  func.func @_matmul_bias_kernel(%arg0: i32, %arg1: memref<128x256xf32, #tpu.memory_space<vmem>>, %arg2: memref<256x128xf32, #tpu.memory_space<vmem>>, %arg3: memref<1x128xf32, #tpu.memory_space<vmem>>, %arg4: memref<128x128xf32, #tpu.memory_space<vmem>>) attributes {dimension_semantics = [#tpu.dimension_semantics<parallel>], iteration_bounds = array<i64: 1>, scalar_prefetch = 0 : i64, scratch_operands = 0 : i64, tpu.core_type = #tpu.core_type<tc>, window_params = [{transform_indices = @transform_0, window_bounds = array<i64: 128, 256>}, {pipeline_mode = #tpu.pipeline_mode<synchronous>, transform_indices = @transform_1, window_bounds = array<i64: 256, 128>}, {pipeline_mode = #tpu.pipeline_mode<synchronous>, transform_indices = @transform_2, window_bounds = array<i64: 1, 128>}, {transform_indices = @transform_3, window_bounds = array<i64: 128, 128>}]} {
    %c0 = arith.constant 0 : index
    %c0_0 = arith.constant 0 : index
    %0 = vector.load %arg1[%c0, %c0_0] : memref<128x256xf32, #tpu.memory_space<vmem>>, vector<128x256xf32>
    %c0_1 = arith.constant 0 : index
    %c0_2 = arith.constant 0 : index
    %1 = vector.load %arg2[%c0_1, %c0_2] : memref<256x128xf32, #tpu.memory_space<vmem>>, vector<256x128xf32>
    %cst = arith.constant dense<0.000000e+00> : vector<128x128xf32>
    %2 = tpu.matmul %0, %1, %cst {dimension_numbers = #tpu.dot_dimension_numbers<[1], [0], [0], [1], [0, 0, 1, 1], [], []>} : vector<128x256xf32>, vector<256x128xf32>, vector<128x128xf32> -> vector<128x128xf32>
    %c0_3 = arith.constant 0 : index
    %c0_4 = arith.constant 0 : index
    %3 = vector.load %arg3[%c0_3, %c0_4] : memref<1x128xf32, #tpu.memory_space<vmem>>, vector<1x128xf32>
    %4 = vector.broadcast %3 : vector<1x128xf32> to vector<128x128xf32>
    %5 = arith.addf %2, %4 : vector<128x128xf32>
    %c0_5 = arith.constant 0 : index
    %c0_6 = arith.constant 0 : index
    %6 = vector.load %arg4[%c0_5, %c0_6] : memref<128x128xf32, #tpu.memory_space<vmem>>, vector<128x128xf32>
    tpu.vector_store %arg4[%c0_5, %c0_6], %5 {strides = array<i32>} : memref<128x128xf32, #tpu.memory_space<vmem>>, vector<128x128xf32>,
    return
  }
  func.func @transform_0(%arg0: i32) -> (i32, i32) {
    %c0_i32 = arith.constant 0 : i32
    %c0_i32_0 = arith.constant 0 : i32
    return %arg0, %c0_i32 : i32, i32
  }
  func.func @transform_1(%arg0: i32) -> (i32, i32) {
    %c0_i32 = arith.constant 0 : i32
    %c0_i32_0 = arith.constant 0 : i32
    %c0_i32_1 = arith.constant 0 : i32
    return %c0_i32, %c0_i32_0 : i32, i32
  }
  func.func @transform_2(%arg0: i32) -> (i32, i32) {
    %c0_i32 = arith.constant 0 : i32
    %c0_i32_0 = arith.constant 0 : i32
    %c0_i32_1 = arith.constant 0 : i32
    return %c0_i32, %c0_i32_0 : i32, i32
  }
  func.func @transform_3(%arg0: i32) -> (i32, i32) {
    %c0_i32 = arith.constant 0 : i32
    %c0_i32_0 = arith.constant 0 : i32
    return %arg0, %c0_i32 : i32, i32
  }
}

module attributes {stable_mosaic.version = 11 : i64} {
  func.func @_matmul_bias_kernel(%arg0: i32, %arg1: memref<24x512xf32, #tpu.memory_space<vmem>>, %arg2: memref<512x128xf32, #tpu.memory_space<vmem>>, %arg3: memref<1x128xf32, #tpu.memory_space<vmem>>, %arg4: memref<24x128xf32, #tpu.memory_space<vmem>>) attributes {dimension_semantics = [#tpu.dimension_semantics<parallel>], iteration_bounds = array<i64: 1>, scalar_prefetch = 0 : i64, scratch_operands = 0 : i64, tpu.core_type = #tpu.core_type<tc>, window_params = [{transform_indices = @transform_0, window_bounds = array<i64: 24, 512>}, {pipeline_mode = #tpu.pipeline_mode<synchronous>, transform_indices = @transform_1, window_bounds = array<i64: 512, 128>}, {pipeline_mode = #tpu.pipeline_mode<synchronous>, transform_indices = @transform_2, window_bounds = array<i64: 1, 128>}, {transform_indices = @transform_3, window_bounds = array<i64: 24, 128>}]} {
    %c0 = arith.constant 0 : index
    %c0_0 = arith.constant 0 : index
    %0 = vector.load %arg1[%c0, %c0_0] : memref<24x512xf32, #tpu.memory_space<vmem>>, vector<24x512xf32>
    %c0_1 = arith.constant 0 : index
    %c0_2 = arith.constant 0 : index
    %1 = vector.load %arg2[%c0_1, %c0_2] : memref<512x128xf32, #tpu.memory_space<vmem>>, vector<512x128xf32>
    %cst = arith.constant dense<0.000000e+00> : vector<24x128xf32>
    %2 = tpu.matmul %0, %1, %cst {dimension_numbers = #tpu.dot_dimension_numbers<[1], [0], [0], [1], [0, 0, 1, 1], [], []>} : vector<24x512xf32>, vector<512x128xf32>, vector<24x128xf32> -> vector<24x128xf32>
    %c0_3 = arith.constant 0 : index
    %c0_4 = arith.constant 0 : index
    %3 = vector.load %arg3[%c0_3, %c0_4] : memref<1x128xf32, #tpu.memory_space<vmem>>, vector<1x128xf32>
    %4 = vector.broadcast %3 : vector<1x128xf32> to vector<24x128xf32>
    %5 = arith.addf %2, %4 : vector<24x128xf32>
    %c0_5 = arith.constant 0 : index
    %c0_6 = arith.constant 0 : index
    %6 = vector.load %arg4[%c0_5, %c0_6] : memref<24x128xf32, #tpu.memory_space<vmem>>, vector<24x128xf32>
    tpu.vector_store %arg4[%c0_5, %c0_6], %5 {strides = array<i32>} : memref<24x128xf32, #tpu.memory_space<vmem>>, vector<24x128xf32>,
    return
  }
  func.func @transform_0(%arg0: i32) -> (i32, i32) {
    %c0_i32 = arith.constant 0 : i32
    %c0_i32_0 = arith.constant 0 : i32
    return %arg0, %c0_i32 : i32, i32
  }
  func.func @transform_1(%arg0: i32) -> (i32, i32) {
    %c0_i32 = arith.constant 0 : i32
    %c0_i32_0 = arith.constant 0 : i32
    %c0_i32_1 = arith.constant 0 : i32
    return %c0_i32, %c0_i32_0 : i32, i32
  }
  func.func @transform_2(%arg0: i32) -> (i32, i32) {
    %c0_i32 = arith.constant 0 : i32
    %c0_i32_0 = arith.constant 0 : i32
    %c0_i32_1 = arith.constant 0 : i32
    return %c0_i32, %c0_i32_0 : i32, i32
  }
  func.func @transform_3(%arg0: i32) -> (i32, i32) {
    %c0_i32 = arith.constant 0 : i32
    %c0_i32_0 = arith.constant 0 : i32
    return %arg0, %c0_i32 : i32, i32
  }
}

module attributes {stable_mosaic.version = 11 : i64} {
  func.func @_matmul_bias_kernel(%arg0: i32, %arg1: memref<8x640xf32, #tpu.memory_space<vmem>>, %arg2: memref<640x128xf32, #tpu.memory_space<vmem>>, %arg3: memref<1x128xf32, #tpu.memory_space<vmem>>, %arg4: memref<8x128xf32, #tpu.memory_space<vmem>>) attributes {dimension_semantics = [#tpu.dimension_semantics<parallel>], iteration_bounds = array<i64: 1>, scalar_prefetch = 0 : i64, scratch_operands = 0 : i64, tpu.core_type = #tpu.core_type<tc>, window_params = [{transform_indices = @transform_0, window_bounds = array<i64: 8, 640>}, {pipeline_mode = #tpu.pipeline_mode<synchronous>, transform_indices = @transform_1, window_bounds = array<i64: 640, 128>}, {pipeline_mode = #tpu.pipeline_mode<synchronous>, transform_indices = @transform_2, window_bounds = array<i64: 1, 128>}, {transform_indices = @transform_3, window_bounds = array<i64: 8, 128>}]} {
    %c0 = arith.constant 0 : index
    %c0_0 = arith.constant 0 : index
    %0 = vector.load %arg1[%c0, %c0_0] : memref<8x640xf32, #tpu.memory_space<vmem>>, vector<8x640xf32>
    %c0_1 = arith.constant 0 : index
    %c0_2 = arith.constant 0 : index
    %1 = vector.load %arg2[%c0_1, %c0_2] : memref<640x128xf32, #tpu.memory_space<vmem>>, vector<640x128xf32>
    %cst = arith.constant dense<0.000000e+00> : vector<8x128xf32>
    %2 = tpu.matmul %0, %1, %cst {dimension_numbers = #tpu.dot_dimension_numbers<[1], [0], [0], [1], [0, 0, 1, 1], [], []>} : vector<8x640xf32>, vector<640x128xf32>, vector<8x128xf32> -> vector<8x128xf32>
    %c0_3 = arith.constant 0 : index
    %c0_4 = arith.constant 0 : index
    %3 = vector.load %arg3[%c0_3, %c0_4] : memref<1x128xf32, #tpu.memory_space<vmem>>, vector<1x128xf32>
    %4 = vector.broadcast %3 : vector<1x128xf32> to vector<8x128xf32>
    %5 = arith.addf %2, %4 : vector<8x128xf32>
    %c0_5 = arith.constant 0 : index
    %c0_6 = arith.constant 0 : index
    %6 = vector.load %arg4[%c0_5, %c0_6] : memref<8x128xf32, #tpu.memory_space<vmem>>, vector<8x128xf32>
    tpu.vector_store %arg4[%c0_5, %c0_6], %5 {strides = array<i32>} : memref<8x128xf32, #tpu.memory_space<vmem>>, vector<8x128xf32>,
    return
  }
  func.func @transform_0(%arg0: i32) -> (i32, i32) {
    %c0_i32 = arith.constant 0 : i32
    %c0_i32_0 = arith.constant 0 : i32
    return %arg0, %c0_i32 : i32, i32
  }
  func.func @transform_1(%arg0: i32) -> (i32, i32) {
    %c0_i32 = arith.constant 0 : i32
    %c0_i32_0 = arith.constant 0 : i32
    %c0_i32_1 = arith.constant 0 : i32
    return %c0_i32, %c0_i32_0 : i32, i32
  }
  func.func @transform_2(%arg0: i32) -> (i32, i32) {
    %c0_i32 = arith.constant 0 : i32
    %c0_i32_0 = arith.constant 0 : i32
    %c0_i32_1 = arith.constant 0 : i32
    return %c0_i32, %c0_i32_0 : i32, i32
  }
  func.func @transform_3(%arg0: i32) -> (i32, i32) {
    %c0_i32 = arith.constant 0 : i32
    %c0_i32_0 = arith.constant 0 : i32
    return %arg0, %c0_i32 : i32, i32
  }
}

</mosaic_0001>

<llo_original>
// kernel: _forward_impl.3
$region0: #{_forward_impl.3}
  #allocation0 [shape = 'u32[]', space=smem, size = 0x4, offset = 0x4, fixed_abs, tag = 'smem constant byte address 0x4 - core index']
  #allocation1 [shape = 'u32[144,128]{1,0:T(1,128)}', space=vmem, size = 0x12000, scoped, tag = 'internal scratch']
  %s0 = inlined_call_operand.vmem [shape: f32[128,256], index: 0, kind: input, shape index: {}]
  %s1 = inlined_call_operand.vmem [shape: f32[256,128], index: 1, kind: input, shape index: {}]
  %s2 = inlined_call_operand.vmem [shape: f32[1,128], index: 2, kind: input, shape index: {}]
  %s3 = inlined_call_operand.vmem [shape: f32[128,128], index: 3, kind: output, shape index: {}]
  %s4 = sld [smem:[#allocation0]]
  $region22: #{_forward_impl.3} parent=0
    _
  %s6 = ssub.s32 1, %s4
  %s7 = scalar_select 0, %s6, %s4
  // Predicated region
  $region2: #{_forward_impl.3} parent=0 // pred_check
    _
  $region3: #{_forward_impl.3} parent=0 // pred_check_branch
    %9 = sbr.rel (0) target = $region5
  $region4: #{_forward_impl.3} parent=0 // pred_region
    _
  $region5: #{_forward_impl.3} parent=0 // pred_fallthru
    _
  // Predicated region
  $region6: #{_forward_impl.3} parent=0 // pred_check
    _
  $region7: #{_forward_impl.3} parent=0 // pred_check_branch
    %11 = sbr.rel (0) target = $region9
  $region8: #{_forward_impl.3} parent=0 // pred_region
    _
  $region9: #{_forward_impl.3} parent=0 // pred_fallthru
    _
  // Predicated region
  $region10: #{_forward_impl.3} parent=0 // pred_check
    _
  $region11: #{_forward_impl.3} parent=0 // pred_check_branch
    %13 = sbr.rel (0) target = $region13
  $region12: #{_forward_impl.3} parent=0 // pred_region
    _
  $region13: #{_forward_impl.3} parent=0 // pred_fallthru
    _
  %v14 = vld [vmem:[%s0] sm:$0xff]
  %v15 = vld [vmem:[%s0 + $0x8] sm:$0xff]
  %v16 = vld [vmem:[%s0 + $0x10] sm:$0xff]
  %v17 = vld [vmem:[%s0 + $0x18] sm:$0xff]
  %v18 = vld [vmem:[%s0 + $0x20] sm:$0xff]
  %v19 = vld [vmem:[%s0 + $0x28] sm:$0xff]
  %v20 = vld [vmem:[%s0 + $0x30] sm:$0xff]
  %v21 = vld [vmem:[%s0 + $0x38] sm:$0xff]
  %v22 = vld [vmem:[%s0 + $0x40] sm:$0xff]
  %v23 = vld [vmem:[%s0 + $0x48] sm:$0xff]
  %v24 = vld [vmem:[%s0 + $0x50] sm:$0xff]
  %v25 = vld [vmem:[%s0 + $0x58] sm:$0xff]
  %v26 = vld [vmem:[%s0 + $0x60] sm:$0xff]
  %v27 = vld [vmem:[%s0 + $0x68] sm:$0xff]
  %v28 = vld [vmem:[%s0 + $0x70] sm:$0xff]
  %v29 = vld [vmem:[%s0 + $0x78] sm:$0xff]
  %v30 = vld [vmem:[%s0 + $0x80] sm:$0xff]
  %v31 = vld [vmem:[%s0 + $0x88] sm:$0xff]
  %v32 = vld [vmem:[%s0 + $0x90] sm:$0xff]
  %v33 = vld [vmem:[%s0 + $0x98] sm:$0xff]
  %v34 = vld [vmem:[%s0 + $0xa0] sm:$0xff]
  %v35 = vld [vmem:[%s0 + $0xa8] sm:$0xff]
  %v36 = vld [vmem:[%s0 + $0xb0] sm:$0xff]
  %v37 = vld [vmem:[%s0 + $0xb8] sm:$0xff]
  %v38 = vld [vmem:[%s0 + $0xc0] sm:$0xff]
  %v39 = vld [vmem:[%s0 + $0xc8] sm:$0xff]
  %v40 = vld [vmem:[%s0 + $0xd0] sm:$0xff]
  %v41 = vld [vmem:[%s0 + $0xd8] sm:$0xff]
  %v42 = vld [vmem:[%s0 + $0xe0] sm:$0xff]
  %v43 = vld [vmem:[%s0 + $0xe8] sm:$0xff]
  %v44 = vld [vmem:[%s0 + $0xf0] sm:$0xff]
  %v45 = vld [vmem:[%s0 + $0xf8] sm:$0xff]
  %v46 = vld [vmem:[%s1] sm:$0xff]
  %v47 = vld [vmem:[%s1 + $0x8] sm:$0xff]
  %v48 = vld [vmem:[%s1 + $0x10] sm:$0xff]
  %v49 = vld [vmem:[%s1 + $0x18] sm:$0xff]
  %v50 = vld [vmem:[%s1 + $0x20] sm:$0xff]
  %v51 = vld [vmem:[%s1 + $0x28] sm:$0xff]
  %v52 = vld [vmem:[%s1 + $0x30] sm:$0xff]
  %v53 = vld [vmem:[%s1 + $0x38] sm:$0xff]
  %v54 = vld [vmem:[%s1 + $0x40] sm:$0xff]
  %v55 = vld [vmem:[%s1 + $0x48] sm:$0xff]
  %v56 = vld [vmem:[%s1 + $0x50] sm:$0xff]
  %v57 = vld [vmem:[%s1 + $0x58] sm:$0xff]
  %v58 = vld [vmem:[%s1 + $0x60] sm:$0xff]
  %v59 = vld [vmem:[%s1 + $0x68] sm:$0xff]
  %v60 = vld [vmem:[%s1 + $0x70] sm:$0xff]
  %v61 = vld [vmem:[%s1 + $0x78] sm:$0xff]
  %v62 = vld [vmem:[%s1 + $0x80] sm:$0xff]
  %v63 = vld [vmem:[%s1 + $0x88] sm:$0xff]
  %v64 = vld [vmem:[%s1 + $0x90] sm:$0xff]
  %v65 = vld [vmem:[%s1 + $0x98] sm:$0xff]
  %v66 = vld [vmem:[%s1 + $0xa0] sm:$0xff]
  %v67 = vld [vmem:[%s1 + $0xa8] sm:$0xff]
  %v68 = vld [vmem:[%s1 + $0xb0] sm:$0xff]
  %v69 = vld [vmem:[%s1 + $0xb8] sm:$0xff]
  %v70 = vld [vmem:[%s1 + $0xc0] sm:$0xff]
  %v71 = vld [vmem:[%s1 + $0xc8] sm:$0xff]
  %v72 = vld [vmem:[%s1 + $0xd0] sm:$0xff]
  %v73 = vld [vmem:[%s1 + $0xd8] sm:$0xff]
  %v74 = vld [vmem:[%s1 + $0xe0] sm:$0xff]
  %v75 = vld [vmem:[%s1 + $0xe8] sm:$0xff]
  %v76 = vld [vmem:[%s1 + $0xf0] sm:$0xff]
  %v77 = vld [vmem:[%s1 + $0xf8] sm:$0xff]
  %v78 = vld [vmem:[%s2] sm:$0x1]
  %v80 = vlaneseq
  %v81 = vshrl.u32 %v80, 7
  %v82 = vsub.s32 0, %v81
  %v83 = vrot.slane %v78, %v82
  %85 = vmatprep.subr.mxu0 0.0
  %86 = vmatpush1.msra.mxu0 %v61
  %87 = vmatprep.subr.mxu0 0.0
  %88 = vmatpush1.msra.mxu0 %v60
  %89 = vmatprep.subr.mxu0 0.0
  %90 = vmatpush1.msra.mxu0 %v59
  %91 = vmatprep.subr.mxu0 0.0
  %92 = vmatpush1.msra.mxu0 %v58
  %93 = vmatprep.subr.mxu0 0.0
  %94 = vmatpush1.msra.mxu0 %v57
  %95 = vmatprep.subr.mxu0 0.0
  %96 = vmatpush1.msra.mxu0 %v56
  %97 = vmatprep.subr.mxu0 0.0
  %98 = vmatpush1.msra.mxu0 %v55
  %99 = vmatprep.subr.mxu0 0.0
  %100 = vmatpush1.msra.mxu0 %v54
  %101 = vmatprep.subr.mxu0 0.0
  %102 = vmatpush1.msra.mxu0 %v53
  %103 = vmatprep.subr.mxu0 0.0
  %104 = vmatpush1.msra.mxu0 %v52
  %105 = vmatprep.subr.mxu0 0.0
  %106 = vmatpush1.msra.mxu0 %v51
  %107 = vmatprep.subr.mxu0 0.0
  %108 = vmatpush1.msra.mxu0 %v50
  %109 = vmatprep.subr.mxu0 0.0
  %110 = vmatpush1.msra.mxu0 %v49
  %111 = vmatprep.subr.mxu0 0.0
  %112 = vmatpush1.msra.mxu0 %v48
  %113 = vmatprep.subr.mxu0 0.0
  %114 = vmatpush1.msra.mxu0 %v47
  %115 = vmatprep.subr.mxu0 0.0
  %116 = vmatpush1.msra.mxu0 %v46
  %117 = vmatprep.subr.mxu0 0.0
  %118 = vmatpush2.msra.mxu0 %v77
  %119 = vmatprep.subr.mxu0 0.0
  %120 = vmatpush2.msra.mxu0 %v76
  %121 = vmatprep.subr.mxu0 0.0
  %122 = vmatpush2.msra.mxu0 %v75
  %123 = vmatprep.subr.mxu0 0.0
  %124 = vmatpush2.msra.mxu0 %v74
  %125 = vmatprep.subr.mxu0 0.0
  %126 = vmatpush2.msra.mxu0 %v73
  %127 = vmatprep.subr.mxu0 0.0
  %128 = vmatpush2.msra.mxu0 %v72
  %129 = vmatprep.subr.mxu0 0.0
  %130 = vmatpush2.msra.mxu0 %v71
  %131 = vmatprep.subr.mxu0 0.0
  %132 = vmatpush2.msra.mxu0 %v70
  %133 = vmatprep.subr.mxu0 0.0
  %134 = vmatpush2.msra.mxu0 %v69
  %135 = vmatprep.subr.mxu0 0.0
  %136 = vmatpush2.msra.mxu0 %v68
  %137 = vmatprep.subr.mxu0 0.0
  %138 = vmatpush2.msra.mxu0 %v67
  %139 = vmatprep.subr.mxu0 0.0
  %140 = vmatpush2.msra.mxu0 %v66
  %141 = vmatprep.subr.mxu0 0.0
  %142 = vmatpush2.msra.mxu0 %v65
  %143 = vmatprep.subr.mxu0 0.0
  %144 = vmatpush2.msra.mxu0 %v64
  %145 = vmatprep.subr.mxu0 0.0
  %146 = vmatpush2.msra.mxu0 %v63
  %147 = vmatprep.subr.mxu0 0.0
  %148 = vmatpush2.msra.mxu0 %v62
  %149 = vmatprep.mubr.f32.mxu0 %v15
  %150 = vmatmul.mubr.f32.gmra.mxu0 %v14
  %v151 = vpop.f32.mrf.mxu0
  %v152 = vadd.f32 %v83, %v151
  %v153 = vpop.f32.mrf.mxu0
  %154 = vmatprep.mubr.f32.mxu0 %v17
  %155 = vmatmul.mubr.f32.gmra.mxu0 %v16
  %v156 = vpop.f32.mrf.mxu0
  %v157 = vadd.f32 %v83, %v156
  %v158 = vpop.f32.mrf.mxu0
  %159 = vmatprep.mubr.f32.mxu0 %v19
  %160 = vmatmul.mubr.f32.gmra.mxu0 %v18
  %v161 = vpop.f32.mrf.mxu0
  %v162 = vadd.f32 %v83, %v161
  %v163 = vpop.f32.mrf.mxu0
  %164 = vmatprep.mubr.f32.mxu0 %v21
  %165 = vmatmul.mubr.f32.gmra.mxu0 %v20
  %v166 = vpop.f32.mrf.mxu0
  %v167 = vadd.f32 %v83, %v166
  %v168 = vpop.f32.mrf.mxu0
  %169 = vmatprep.mubr.f32.mxu0 %v23
  %170 = vmatmul.mubr.f32.gmra.mxu0 %v22
  %v171 = vpop.f32.mrf.mxu0
  %v172 = vadd.f32 %v83, %v171
  %v173 = vpop.f32.mrf.mxu0
  %174 = vmatprep.mubr.f32.mxu0 %v25
  %175 = vmatmul.mubr.f32.gmra.mxu0 %v24
  %v176 = vpop.f32.mrf.mxu0
  %v177 = vadd.f32 %v83, %v176
  %v178 = vpop.f32.mrf.mxu0
  %179 = vmatprep.mubr.f32.mxu0 %v27
  %180 = vmatmul.mubr.f32.gmra.mxu0 %v26
  %v181 = vpop.f32.mrf.mxu0
  %v182 = vadd.f32 %v83, %v181
  %v183 = vpop.f32.mrf.mxu0
  %184 = vmatprep.mubr.f32.mxu0 %v29
  %185 = vmatmul.mubr.f32.gmra.mxu0 %v28
  %v186 = vpop.f32.mrf.mxu0
  %v187 = vadd.f32 %v83, %v186
  %v188 = vpop.f32.mrf.mxu0
  %189 = vmatprep.mubr.f32.mxu0 %v31
  %190 = vmatmul.mubr.f32.gmra.mxu0 %v30
  %v191 = vpop.f32.mrf.mxu0
  %v192 = vadd.f32 %v83, %v191
  %v193 = vpop.f32.mrf.mxu0
  %194 = vmatprep.mubr.f32.mxu0 %v33
  %195 = vmatmul.mubr.f32.gmra.mxu0 %v32
  %v196 = vpop.f32.mrf.mxu0
  %v197 = vadd.f32 %v83, %v196
  %v198 = vpop.f32.mrf.mxu0
  %199 = vmatprep.mubr.f32.mxu0 %v35
  %200 = vmatmul.mubr.f32.gmra.mxu0 %v34
  %v201 = vpop.f32.mrf.mxu0
  %v202 = vadd.f32 %v83, %v201
  %v203 = vpop.f32.mrf.mxu0
  %204 = vmatprep.mubr.f32.mxu0 %v37
  %205 = vmatmul.mubr.f32.gmra.mxu0 %v36
  %v206 = vpop.f32.mrf.mxu0
  %v207 = vadd.f32 %v83, %v206
  %v208 = vpop.f32.mrf.mxu0
  %209 = vmatprep.mubr.f32.mxu0 %v39
  %210 = vmatmul.mubr.f32.gmra.mxu0 %v38
  %v211 = vpop.f32.mrf.mxu0
  %v212 = vadd.f32 %v83, %v211
  %v213 = vpop.f32.mrf.mxu0
  %214 = vmatprep.mubr.f32.mxu0 %v41
  %215 = vmatmul.mubr.f32.gmra.mxu0 %v40
  %v216 = vpop.f32.mrf.mxu0
  %v217 = vadd.f32 %v83, %v216
  %v218 = vpop.f32.mrf.mxu0
  %219 = vmatprep.mubr.f32.mxu0 %v43
  %220 = vmatmul.mubr.f32.gmra.mxu0 %v42
  %v221 = vpop.f32.mrf.mxu0
  %v222 = vadd.f32 %v83, %v221
  %v223 = vpop.f32.mrf.mxu0
  %224 = vmatprep.mubr.f32.mxu0 %v45
  %225 = vmatmul.mubr.f32.gmra.mxu0 %v44
  %v226 = vpop.f32.mrf.mxu0
  %v227 = vadd.f32 %v83, %v226
  %v228 = vpop.f32.mrf.mxu0
  %229 = vdwg.mxu0
  %230 = vst [vmem:[%s3] sm:$0xff] %v152
  %231 = vst [vmem:[%s3 + $0x8] sm:$0xff] %v157
  %232 = vst [vmem:[%s3 + $0x10] sm:$0xff] %v162
  %233 = vst [vmem:[%s3 + $0x18] sm:$0xff] %v167
  %234 = vst [vmem:[%s3 + $0x20] sm:$0xff] %v172
  %235 = vst [vmem:[%s3 + $0x28] sm:$0xff] %v177
  %236 = vst [vmem:[%s3 + $0x30] sm:$0xff] %v182
  %237 = vst [vmem:[%s3 + $0x38] sm:$0xff] %v187
  %238 = vst [vmem:[%s3 + $0x40] sm:$0xff] %v192
  %239 = vst [vmem:[%s3 + $0x48] sm:$0xff] %v197
  %240 = vst [vmem:[%s3 + $0x50] sm:$0xff] %v202
  %241 = vst [vmem:[%s3 + $0x58] sm:$0xff] %v207
  %242 = vst [vmem:[%s3 + $0x60] sm:$0xff] %v212
  %243 = vst [vmem:[%s3 + $0x68] sm:$0xff] %v217
  %244 = vst [vmem:[%s3 + $0x70] sm:$0xff] %v222
  %245 = vst [vmem:[%s3 + $0x78] sm:$0xff] %v227
  // Predicated region
  $region14: #{_forward_impl.3} parent=0 // pred_check
    _
  $region15: #{_forward_impl.3} parent=0 // pred_check_branch
    %247 = sbr.rel (0) target = $region17
  $region16: #{_forward_impl.3} parent=0 // pred_region
    _
  $region17: #{_forward_impl.3} parent=0 // pred_fallthru
    _
  // Predicated region
  $region18: #{_forward_impl.3} parent=0 // pred_check
    _
  $region19: #{_forward_impl.3} parent=0 // pred_check_branch
    %249 = sbr.rel (0) target = $region21
  $region20: #{_forward_impl.3} parent=0 // pred_region
    _
  $region21: #{_forward_impl.3} parent=0 // pred_fallthru
    _

// kernel: _forward_impl.4
$region0: #{_forward_impl.4}
  #allocation0 [shape = 'u32[]', space=smem, size = 0x4, offset = 0x4, fixed_abs, tag = 'smem constant byte address 0x4 - core index']
  #allocation1 [shape = 'u32[144,128]{1,0:T(1,128)}', space=vmem, size = 0x12000, scoped, tag = 'internal scratch']
  %s0 = inlined_call_operand.vmem [shape: f32[24,512], index: 0, kind: input, shape index: {}]
  %s1 = inlined_call_operand.vmem [shape: f32[512,128], index: 1, kind: input, shape index: {}]
  %s2 = inlined_call_operand.vmem [shape: f32[1,128], index: 2, kind: input, shape index: {}]
  %s3 = inlined_call_operand.vmem [shape: f32[24,128], index: 3, kind: output, shape index: {}]
  %s4 = sld [smem:[#allocation0]]
  $region22: #{_forward_impl.4} parent=0
    _
  %s6 = ssub.s32 1, %s4
  %s7 = scalar_select 0, %s6, %s4
  // Predicated region
  $region2: #{_forward_impl.4} parent=0 // pred_check
    _
  $region3: #{_forward_impl.4} parent=0 // pred_check_branch
    %9 = sbr.rel (0) target = $region5
  $region4: #{_forward_impl.4} parent=0 // pred_region
    _
  $region5: #{_forward_impl.4} parent=0 // pred_fallthru
    _
  // Predicated region
  $region6: #{_forward_impl.4} parent=0 // pred_check
    _
  $region7: #{_forward_impl.4} parent=0 // pred_check_branch
    %11 = sbr.rel (0) target = $region9
  $region8: #{_forward_impl.4} parent=0 // pred_region
    _
  $region9: #{_forward_impl.4} parent=0 // pred_fallthru
    _
  // Predicated region
  $region10: #{_forward_impl.4} parent=0 // pred_check
    _
  $region11: #{_forward_impl.4} parent=0 // pred_check_branch
    %13 = sbr.rel (0) target = $region13
  $region12: #{_forward_impl.4} parent=0 // pred_region
    _
  $region13: #{_forward_impl.4} parent=0 // pred_fallthru
    _
  %v14 = vld [vmem:[%s0] sm:$0xff]
  %v15 = vld [vmem:[%s0 + $0x8] sm:$0xff]
  %v16 = vld [vmem:[%s0 + $0x10] sm:$0xff]
  %v17 = vld [vmem:[%s0 + $0x18] sm:$0xff]
  %v18 = vld [vmem:[%s0 + $0x20] sm:$0xff]
  %v19 = vld [vmem:[%s0 + $0x28] sm:$0xff]
  %v20 = vld [vmem:[%s0 + $0x30] sm:$0xff]
  %v21 = vld [vmem:[%s0 + $0x38] sm:$0xff]
  %v22 = vld [vmem:[%s0 + $0x40] sm:$0xff]
  %v23 = vld [vmem:[%s0 + $0x48] sm:$0xff]
  %v24 = vld [vmem:[%s0 + $0x50] sm:$0xff]
  %v25 = vld [vmem:[%s0 + $0x58] sm:$0xff]
  %v26 = vld [vmem:[%s1] sm:$0xff]
  %v27 = vld [vmem:[%s1 + $0x8] sm:$0xff]
  %v28 = vld [vmem:[%s1 + $0x10] sm:$0xff]
  %v29 = vld [vmem:[%s1 + $0x18] sm:$0xff]
  %v30 = vld [vmem:[%s1 + $0x20] sm:$0xff]
  %v31 = vld [vmem:[%s1 + $0x28] sm:$0xff]
  %v32 = vld [vmem:[%s1 + $0x30] sm:$0xff]
  %v33 = vld [vmem:[%s1 + $0x38] sm:$0xff]
  %v34 = vld [vmem:[%s1 + $0x40] sm:$0xff]
  %v35 = vld [vmem:[%s1 + $0x48] sm:$0xff]
  %v36 = vld [vmem:[%s1 + $0x50] sm:$0xff]
  %v37 = vld [vmem:[%s1 + $0x58] sm:$0xff]
  %v38 = vld [vmem:[%s1 + $0x60] sm:$0xff]
  %v39 = vld [vmem:[%s1 + $0x68] sm:$0xff]
  %v40 = vld [vmem:[%s1 + $0x70] sm:$0xff]
  %v41 = vld [vmem:[%s1 + $0x78] sm:$0xff]
  %v42 = vld [vmem:[%s1 + $0x80] sm:$0xff]
  %v43 = vld [vmem:[%s1 + $0x88] sm:$0xff]
  %v44 = vld [vmem:[%s1 + $0x90] sm:$0xff]
  %v45 = vld [vmem:[%s1 + $0x98] sm:$0xff]
  %v46 = vld [vmem:[%s1 + $0xa0] sm:$0xff]
  %v47 = vld [vmem:[%s1 + $0xa8] sm:$0xff]
  %v48 = vld [vmem:[%s1 + $0xb0] sm:$0xff]
  %v49 = vld [vmem:[%s1 + $0xb8] sm:$0xff]
  %v50 = vld [vmem:[%s1 + $0xc0] sm:$0xff]
  %v51 = vld [vmem:[%s1 + $0xc8] sm:$0xff]
  %v52 = vld [vmem:[%s1 + $0xd0] sm:$0xff]
  %v53 = vld [vmem:[%s1 + $0xd8] sm:$0xff]
  %v54 = vld [vmem:[%s1 + $0xe0] sm:$0xff]
  %v55 = vld [vmem:[%s1 + $0xe8] sm:$0xff]
  %v56 = vld [vmem:[%s1 + $0xf0] sm:$0xff]
  %v57 = vld [vmem:[%s1 + $0xf8] sm:$0xff]
  %v58 = vld [vmem:[%s1 + $0x100] sm:$0xff]
  %v59 = vld [vmem:[%s1 + $0x108] sm:$0xff]
  %v60 = vld [vmem:[%s1 + $0x110] sm:$0xff]
  %v61 = vld [vmem:[%s1 + $0x118] sm:$0xff]
  %v62 = vld [vmem:[%s1 + $0x120] sm:$0xff]
  %v63 = vld [vmem:[%s1 + $0x128] sm:$0xff]
  %v64 = vld [vmem:[%s1 + $0x130] sm:$0xff]
  %v65 = vld [vmem:[%s1 + $0x138] sm:$0xff]
  %v66 = vld [vmem:[%s1 + $0x140] sm:$0xff]
  %v67 = vld [vmem:[%s1 + $0x148] sm:$0xff]
  %v68 = vld [vmem:[%s1 + $0x150] sm:$0xff]
  %v69 = vld [vmem:[%s1 + $0x158] sm:$0xff]
  %v70 = vld [vmem:[%s1 + $0x160] sm:$0xff]
  %v71 = vld [vmem:[%s1 + $0x168] sm:$0xff]
  %v72 = vld [vmem:[%s1 + $0x170] sm:$0xff]
  %v73 = vld [vmem:[%s1 + $0x178] sm:$0xff]
  %v74 = vld [vmem:[%s1 + $0x180] sm:$0xff]
  %v75 = vld [vmem:[%s1 + $0x188] sm:$0xff]
  %v76 = vld [vmem:[%s1 + $0x190] sm:$0xff]
  %v77 = vld [vmem:[%s1 + $0x198] sm:$0xff]
  %v78 = vld [vmem:[%s1 + $0x1a0] sm:$0xff]
  %v79 = vld [vmem:[%s1 + $0x1a8] sm:$0xff]
  %v80 = vld [vmem:[%s1 + $0x1b0] sm:$0xff]
  %v81 = vld [vmem:[%s1 + $0x1b8] sm:$0xff]
  %v82 = vld [vmem:[%s1 + $0x1c0] sm:$0xff]
  %v83 = vld [vmem:[%s1 + $0x1c8] sm:$0xff]
  %v84 = vld [vmem:[%s1 + $0x1d0] sm:$0xff]
  %v85 = vld [vmem:[%s1 + $0x1d8] sm:$0xff]
  %v86 = vld [vmem:[%s1 + $0x1e0] sm:$0xff]
  %v87 = vld [vmem:[%s1 + $0x1e8] sm:$0xff]
  %v88 = vld [vmem:[%s1 + $0x1f0] sm:$0xff]
  %v89 = vld [vmem:[%s1 + $0x1f8] sm:$0xff]
  %v90 = vld [vmem:[%s2] sm:$0x1]
  %v92 = vlaneseq
  %v93 = vshrl.u32 %v92, 7
  %v94 = vsub.s32 0, %v93
  %v95 = vrot.slane %v90, %v94
  %97 = vmatprep.subr.mxu0 0.0
  %98 = vmatpush1.msra.mxu0 %v41
  %99 = vmatprep.subr.mxu0 0.0
  %100 = vmatpush1.msra.mxu0 %v40
  %101 = vmatprep.subr.mxu0 0.0
  %102 = vmatpush1.msra.mxu0 %v39
  %103 = vmatprep.subr.mxu0 0.0
  %104 = vmatpush1.msra.mxu0 %v38
  %105 = vmatprep.subr.mxu0 0.0
  %106 = vmatpush1.msra.mxu0 %v37
  %107 = vmatprep.subr.mxu0 0.0
  %108 = vmatpush1.msra.mxu0 %v36
  %109 = vmatprep.subr.mxu0 0.0
  %110 = vmatpush1.msra.mxu0 %v35
  %111 = vmatprep.subr.mxu0 0.0
  %112 = vmatpush1.msra.mxu0 %v34
  %113 = vmatprep.subr.mxu0 0.0
  %114 = vmatpush1.msra.mxu0 %v33
  %115 = vmatprep.subr.mxu0 0.0
  %116 = vmatpush1.msra.mxu0 %v32
  %117 = vmatprep.subr.mxu0 0.0
  %118 = vmatpush1.msra.mxu0 %v31
  %119 = vmatprep.subr.mxu0 0.0
  %120 = vmatpush1.msra.mxu0 %v30
  %121 = vmatprep.subr.mxu0 0.0
  %122 = vmatpush1.msra.mxu0 %v29
  %123 = vmatprep.subr.mxu0 0.0
  %124 = vmatpush1.msra.mxu0 %v28
  %125 = vmatprep.subr.mxu0 0.0
  %126 = vmatpush1.msra.mxu0 %v27
  %127 = vmatprep.subr.mxu0 0.0
  %128 = vmatpush1.msra.mxu0 %v26
  %129 = vmatprep.subr.mxu0 0.0
  %130 = vmatpush2.msra.mxu0 %v57
  %131 = vmatprep.subr.mxu0 0.0
  %132 = vmatpush2.msra.mxu0 %v56
  %133 = vmatprep.subr.mxu0 0.0
  %134 = vmatpush2.msra.mxu0 %v55
  %135 = vmatprep.subr.mxu0 0.0
  %136 = vmatpush2.msra.mxu0 %v54
  %137 = vmatprep.subr.mxu0 0.0
  %138 = vmatpush2.msra.mxu0 %v53
  %139 = vmatprep.subr.mxu0 0.0
  %140 = vmatpush2.msra.mxu0 %v52
  %141 = vmatprep.subr.mxu0 0.0
  %142 = vmatpush2.msra.mxu0 %v51
  %143 = vmatprep.subr.mxu0 0.0
  %144 = vmatpush2.msra.mxu0 %v50
  %145 = vmatprep.subr.mxu0 0.0
  %146 = vmatpush2.msra.mxu0 %v49
  %147 = vmatprep.subr.mxu0 0.0
  %148 = vmatpush2.msra.mxu0 %v48
  %149 = vmatprep.subr.mxu0 0.0
  %150 = vmatpush2.msra.mxu0 %v47
  %151 = vmatprep.subr.mxu0 0.0
  %152 = vmatpush2.msra.mxu0 %v46
  %153 = vmatprep.subr.mxu0 0.0
  %154 = vmatpush2.msra.mxu0 %v45
  %155 = vmatprep.subr.mxu0 0.0
  %156 = vmatpush2.msra.mxu0 %v44
  %157 = vmatprep.subr.mxu0 0.0
  %158 = vmatpush2.msra.mxu0 %v43
  %159 = vmatprep.subr.mxu0 0.0
  %160 = vmatpush2.msra.mxu0 %v42
  %161 = vmatprep.mubr.f32.mxu0 %v15
  %162 = vmatmul.mubr.f32.gmra.mxu0 %v14
  %v163 = vpop.f32.mrf.mxu0
  %v164 = vadd.f32 %v95, %v163
  %v165 = vpop.f32.mrf.mxu0
  %166 = vmatprep.mubr.f32.mxu0 %v19
  %167 = vmatmul.mubr.f32.gmra.mxu0 %v18
  %v168 = vpop.f32.mrf.mxu0
  %v169 = vadd.f32 %v95, %v168
  %v170 = vpop.f32.mrf.mxu0
  %171 = vmatprep.mubr.f32.mxu0 %v23
  %172 = vmatmul.mubr.f32.gmra.mxu0 %v22
  %v173 = vpop.f32.mrf.mxu0
  %v174 = vadd.f32 %v95, %v173
  %v175 = vpop.f32.mrf.mxu0
  %176 = vdwg.mxu0
  %177 = vmatprep.subr.mxu0 0.0
  %178 = vmatpush1.msra.mxu0 %v73
  %179 = vmatprep.subr.mxu0 0.0
  %180 = vmatpush1.msra.mxu0 %v72
  %181 = vmatprep.subr.mxu0 0.0
  %182 = vmatpush1.msra.mxu0 %v71
  %183 = vmatprep.subr.mxu0 0.0
  %184 = vmatpush1.msra.mxu0 %v70
  %185 = vmatprep.subr.mxu0 0.0
  %186 = vmatpush1.msra.mxu0 %v69
  %187 = vmatprep.subr.mxu0 0.0
  %188 = vmatpush1.msra.mxu0 %v68
  %189 = vmatprep.subr.mxu0 0.0
  %190 = vmatpush1.msra.mxu0 %v67
  %191 = vmatprep.subr.mxu0 0.0
  %192 = vmatpush1.msra.mxu0 %v66
  %193 = vmatprep.subr.mxu0 0.0
  %194 = vmatpush1.msra.mxu0 %v65
  %195 = vmatprep.subr.mxu0 0.0
  %196 = vmatpush1.msra.mxu0 %v64
  %197 = vmatprep.subr.mxu0 0.0
  %198 = vmatpush1.msra.mxu0 %v63
  %199 = vmatprep.subr.mxu0 0.0
  %200 = vmatpush1.msra.mxu0 %v62
  %201 = vmatprep.subr.mxu0 0.0
  %202 = vmatpush1.msra.mxu0 %v61
  %203 = vmatprep.subr.mxu0 0.0
  %204 = vmatpush1.msra.mxu0 %v60
  %205 = vmatprep.subr.mxu0 0.0
  %206 = vmatpush1.msra.mxu0 %v59
  %207 = vmatprep.subr.mxu0 0.0
  %208 = vmatpush1.msra.mxu0 %v58
  %209 = vmatprep.subr.mxu0 0.0
  %210 = vmatpush2.msra.mxu0 %v89
  %211 = vmatprep.subr.mxu0 0.0
  %212 = vmatpush2.msra.mxu0 %v88
  %213 = vmatprep.subr.mxu0 0.0
  %214 = vmatpush2.msra.mxu0 %v87
  %215 = vmatprep.subr.mxu0 0.0
  %216 = vmatpush2.msra.mxu0 %v86
  %217 = vmatprep.subr.mxu0 0.0
  %218 = vmatpush2.msra.mxu0 %v85
  %219 = vmatprep.subr.mxu0 0.0
  %220 = vmatpush2.msra.mxu0 %v84
  %221 = vmatprep.subr.mxu0 0.0
  %222 = vmatpush2.msra.mxu0 %v83
  %223 = vmatprep.subr.mxu0 0.0
  %224 = vmatpush2.msra.mxu0 %v82
  %225 = vmatprep.subr.mxu0 0.0
  %226 = vmatpush2.msra.mxu0 %v81
  %227 = vmatprep.subr.mxu0 0.0
  %228 = vmatpush2.msra.mxu0 %v80
  %229 = vmatprep.subr.mxu0 0.0
  %230 = vmatpush2.msra.mxu0 %v79
  %231 = vmatprep.subr.mxu0 0.0
  %232 = vmatpush2.msra.mxu0 %v78
  %233 = vmatprep.subr.mxu0 0.0
  %234 = vmatpush2.msra.mxu0 %v77
  %235 = vmatprep.subr.mxu0 0.0
  %236 = vmatpush2.msra.mxu0 %v76
  %237 = vmatprep.subr.mxu0 0.0
  %238 = vmatpush2.msra.mxu0 %v75
  %239 = vmatprep.subr.mxu0 0.0
  %240 = vmatpush2.msra.mxu0 %v74
  %241 = vmatprep.mubr.f32.mxu0 %v17
  %242 = vmatmul.mubr.f32.gmra.mxu0 %v16
  %v243 = vpop.f32.mrf.mxu0
  %v244 = vadd.f32 %v164, %v243
  %v245 = vpop.f32.mrf.mxu0
  %246 = vmatprep.mubr.f32.mxu0 %v21
  %247 = vmatmul.mubr.f32.gmra.mxu0 %v20
  %v248 = vpop.f32.mrf.mxu0
  %v249 = vadd.f32 %v169, %v248
  %v250 = vpop.f32.mrf.mxu0
  %251 = vmatprep.mubr.f32.mxu0 %v25
  %252 = vmatmul.mubr.f32.gmra.mxu0 %v24
  %v253 = vpop.f32.mrf.mxu0
  %v254 = vadd.f32 %v174, %v253
  %v255 = vpop.f32.mrf.mxu0
  %256 = vdwg.mxu0
  %257 = vst [vmem:[%s3] sm:$0xff] %v244
  %258 = vst [vmem:[%s3 + $0x8] sm:$0xff] %v249
  %259 = vst [vmem:[%s3 + $0x10] sm:$0xff] %v254
  // Predicated region
  $region14: #{_forward_impl.4} parent=0 // pred_check
    _
  $region15: #{_forward_impl.4} parent=0 // pred_check_branch
    %261 = sbr.rel (0) target = $region17
  $region16: #{_forward_impl.4} parent=0 // pred_region
    _
  $region17: #{_forward_impl.4} parent=0 // pred_fallthru
    _
  // Predicated region
  $region18: #{_forward_impl.4} parent=0 // pred_check
    _
  $region19: #{_forward_impl.4} parent=0 // pred_check_branch
    %263 = sbr.rel (0) target = $region21
  $region20: #{_forward_impl.4} parent=0 // pred_region
    _
  $region21: #{_forward_impl.4} parent=0 // pred_fallthru
    _

// kernel: _forward_impl.5
$region0: #{_forward_impl.5}
  #allocation0 [shape = 'u32[]', space=smem, size = 0x4, offset = 0x4, fixed_abs, tag = 'smem constant byte address 0x4 - core index']
  #allocation1 [shape = 'u32[144,128]{1,0:T(1,128)}', space=vmem, size = 0x12000, scoped, tag = 'internal scratch']
  %s0 = inlined_call_operand.vmem [shape: f32[8,640], index: 0, kind: input, shape index: {}]
  %s1 = inlined_call_operand.vmem [shape: f32[640,128], index: 1, kind: input, shape index: {}]
  %s2 = inlined_call_operand.vmem [shape: f32[1,128], index: 2, kind: input, shape index: {}]
  %s3 = inlined_call_operand.vmem [shape: f32[8,128], index: 3, kind: output, shape index: {}]
  %s4 = sld [smem:[#allocation0]]
  $region22: #{_forward_impl.5} parent=0
    _
  %s6 = ssub.s32 1, %s4
  %s7 = scalar_select 0, %s6, %s4
  // Predicated region
  $region2: #{_forward_impl.5} parent=0 // pred_check
    _
  $region3: #{_forward_impl.5} parent=0 // pred_check_branch
    %9 = sbr.rel (0) target = $region5
  $region4: #{_forward_impl.5} parent=0 // pred_region
    _
  $region5: #{_forward_impl.5} parent=0 // pred_fallthru
    _
  // Predicated region
  $region6: #{_forward_impl.5} parent=0 // pred_check
    _
  $region7: #{_forward_impl.5} parent=0 // pred_check_branch
    %11 = sbr.rel (0) target = $region9
  $region8: #{_forward_impl.5} parent=0 // pred_region
    _
  $region9: #{_forward_impl.5} parent=0 // pred_fallthru
    _
  // Predicated region
  $region10: #{_forward_impl.5} parent=0 // pred_check
    _
  $region11: #{_forward_impl.5} parent=0 // pred_check_branch
    %13 = sbr.rel (0) target = $region13
  $region12: #{_forward_impl.5} parent=0 // pred_region
    _
  $region13: #{_forward_impl.5} parent=0 // pred_fallthru
    _
  %v14 = vld [vmem:[%s0] sm:$0xff]
  %v15 = vld [vmem:[%s0 + $0x8] sm:$0xff]
  %v16 = vld [vmem:[%s0 + $0x10] sm:$0xff]
  %v17 = vld [vmem:[%s0 + $0x18] sm:$0xff]
  %v18 = vld [vmem:[%s0 + $0x20] sm:$0xff]
  %v19 = vld [vmem:[%s1] sm:$0xff]
  %v20 = vld [vmem:[%s1 + $0x8] sm:$0xff]
  %v21 = vld [vmem:[%s1 + $0x10] sm:$0xff]
  %v22 = vld [vmem:[%s1 + $0x18] sm:$0xff]
  %v23 = vld [vmem:[%s1 + $0x20] sm:$0xff]
  %v24 = vld [vmem:[%s1 + $0x28] sm:$0xff]
  %v25 = vld [vmem:[%s1 + $0x30] sm:$0xff]
  %v26 = vld [vmem:[%s1 + $0x38] sm:$0xff]
  %v27 = vld [vmem:[%s1 + $0x40] sm:$0xff]
  %v28 = vld [vmem:[%s1 + $0x48] sm:$0xff]
  %v29 = vld [vmem:[%s1 + $0x50] sm:$0xff]
  %v30 = vld [vmem:[%s1 + $0x58] sm:$0xff]
  %v31 = vld [vmem:[%s1 + $0x60] sm:$0xff]
  %v32 = vld [vmem:[%s1 + $0x68] sm:$0xff]
  %v33 = vld [vmem:[%s1 + $0x70] sm:$0xff]
  %v34 = vld [vmem:[%s1 + $0x78] sm:$0xff]
  %v35 = vld [vmem:[%s1 + $0x80] sm:$0xff]
  %v36 = vld [vmem:[%s1 + $0x88] sm:$0xff]
  %v37 = vld [vmem:[%s1 + $0x90] sm:$0xff]
  %v38 = vld [vmem:[%s1 + $0x98] sm:$0xff]
  %v39 = vld [vmem:[%s1 + $0xa0] sm:$0xff]
  %v40 = vld [vmem:[%s1 + $0xa8] sm:$0xff]
  %v41 = vld [vmem:[%s1 + $0xb0] sm:$0xff]
  %v42 = vld [vmem:[%s1 + $0xb8] sm:$0xff]
  %v43 = vld [vmem:[%s1 + $0xc0] sm:$0xff]
  %v44 = vld [vmem:[%s1 + $0xc8] sm:$0xff]
  %v45 = vld [vmem:[%s1 + $0xd0] sm:$0xff]
  %v46 = vld [vmem:[%s1 + $0xd8] sm:$0xff]
  %v47 = vld [vmem:[%s1 + $0xe0] sm:$0xff]
  %v48 = vld [vmem:[%s1 + $0xe8] sm:$0xff]
  %v49 = vld [vmem:[%s1 + $0xf0] sm:$0xff]
  %v50 = vld [vmem:[%s1 + $0xf8] sm:$0xff]
  %v51 = vld [vmem:[%s1 + $0x100] sm:$0xff]
  %v52 = vld [vmem:[%s1 + $0x108] sm:$0xff]
  %v53 = vld [vmem:[%s1 + $0x110] sm:$0xff]
  %v54 = vld [vmem:[%s1 + $0x118] sm:$0xff]
  %v55 = vld [vmem:[%s1 + $0x120] sm:$0xff]
  %v56 = vld [vmem:[%s1 + $0x128] sm:$0xff]
  %v57 = vld [vmem:[%s1 + $0x130] sm:$0xff]
  %v58 = vld [vmem:[%s1 + $0x138] sm:$0xff]
  %v59 = vld [vmem:[%s1 + $0x140] sm:$0xff]
  %v60 = vld [vmem:[%s1 + $0x148] sm:$0xff]
  %v61 = vld [vmem:[%s1 + $0x150] sm:$0xff]
  %v62 = vld [vmem:[%s1 + $0x158] sm:$0xff]
  %v63 = vld [vmem:[%s1 + $0x160] sm:$0xff]
  %v64 = vld [vmem:[%s1 + $0x168] sm:$0xff]
  %v65 = vld [vmem:[%s1 + $0x170] sm:$0xff]
  %v66 = vld [vmem:[%s1 + $0x178] sm:$0xff]
  %v67 = vld [vmem:[%s1 + $0x180] sm:$0xff]
  %v68 = vld [vmem:[%s1 + $0x188] sm:$0xff]
  %v69 = vld [vmem:[%s1 + $0x190] sm:$0xff]
  %v70 = vld [vmem:[%s1 + $0x198] sm:$0xff]
  %v71 = vld [vmem:[%s1 + $0x1a0] sm:$0xff]
  %v72 = vld [vmem:[%s1 + $0x1a8] sm:$0xff]
  %v73 = vld [vmem:[%s1 + $0x1b0] sm:$0xff]
  %v74 = vld [vmem:[%s1 + $0x1b8] sm:$0xff]
  %v75 = vld [vmem:[%s1 + $0x1c0] sm:$0xff]
  %v76 = vld [vmem:[%s1 + $0x1c8] sm:$0xff]
  %v77 = vld [vmem:[%s1 + $0x1d0] sm:$0xff]
  %v78 = vld [vmem:[%s1 + $0x1d8] sm:$0xff]
  %v79 = vld [vmem:[%s1 + $0x1e0] sm:$0xff]
  %v80 = vld [vmem:[%s1 + $0x1e8] sm:$0xff]
  %v81 = vld [vmem:[%s1 + $0x1f0] sm:$0xff]
  %v82 = vld [vmem:[%s1 + $0x1f8] sm:$0xff]
  %v83 = vld [vmem:[%s1 + $0x200] sm:$0xff]
  %v84 = vld [vmem:[%s1 + $0x208] sm:$0xff]
  %v85 = vld [vmem:[%s1 + $0x210] sm:$0xff]
  %v86 = vld [vmem:[%s1 + $0x218] sm:$0xff]
  %v87 = vld [vmem:[%s1 + $0x220] sm:$0xff]
  %v88 = vld [vmem:[%s1 + $0x228] sm:$0xff]
  %v89 = vld [vmem:[%s1 + $0x230] sm:$0xff]
  %v90 = vld [vmem:[%s1 + $0x238] sm:$0xff]
  %v91 = vld [vmem:[%s1 + $0x240] sm:$0xff]
  %v92 = vld [vmem:[%s1 + $0x248] sm:$0xff]
  %v93 = vld [vmem:[%s1 + $0x250] sm:$0xff]
  %v94 = vld [vmem:[%s1 + $0x258] sm:$0xff]
  %v95 = vld [vmem:[%s1 + $0x260] sm:$0xff]
  %v96 = vld [vmem:[%s1 + $0x268] sm:$0xff]
  %v97 = vld [vmem:[%s1 + $0x270] sm:$0xff]
  %v98 = vld [vmem:[%s1 + $0x278] sm:$0xff]
  %v99 = vld [vmem:[%s2] sm:$0x1]
  %v101 = vlaneseq
  %v102 = vshrl.u32 %v101, 7
  %v103 = vsub.s32 0, %v102
  %v104 = vrot.slane %v99, %v103
  %106 = vmatprep.subr.mxu0 0.0
  %107 = vmatpush1.msra.mxu0 %v34
  %108 = vmatprep.subr.mxu0 0.0
  %109 = vmatpush1.msra.mxu0 %v33
  %110 = vmatprep.subr.mxu0 0.0
  %111 = vmatpush1.msra.mxu0 %v32
  %112 = vmatprep.subr.mxu0 0.0
  %113 = vmatpush1.msra.mxu0 %v31
  %114 = vmatprep.subr.mxu0 0.0
  %115 = vmatpush1.msra.mxu0 %v30
  %116 = vmatprep.subr.mxu0 0.0
  %117 = vmatpush1.msra.mxu0 %v29
  %118 = vmatprep.subr.mxu0 0.0
  %119 = vmatpush1.msra.mxu0 %v28
  %120 = vmatprep.subr.mxu0 0.0
  %121 = vmatpush1.msra.mxu0 %v27
  %122 = vmatprep.subr.mxu0 0.0
  %123 = vmatpush1.msra.mxu0 %v26
  %124 = vmatprep.subr.mxu0 0.0
  %125 = vmatpush1.msra.mxu0 %v25
  %126 = vmatprep.subr.mxu0 0.0
  %127 = vmatpush1.msra.mxu0 %v24
  %128 = vmatprep.subr.mxu0 0.0
  %129 = vmatpush1.msra.mxu0 %v23
  %130 = vmatprep.subr.mxu0 0.0
  %131 = vmatpush1.msra.mxu0 %v22
  %132 = vmatprep.subr.mxu0 0.0
  %133 = vmatpush1.msra.mxu0 %v21
  %134 = vmatprep.subr.mxu0 0.0
  %135 = vmatpush1.msra.mxu0 %v20
  %136 = vmatprep.subr.mxu0 0.0
  %137 = vmatpush1.msra.mxu0 %v19
  %138 = vmatprep.subr.mxu0 0.0
  %139 = vmatpush2.msra.mxu0 %v50
  %140 = vmatprep.subr.mxu0 0.0
  %141 = vmatpush2.msra.mxu0 %v49
  %142 = vmatprep.subr.mxu0 0.0
  %143 = vmatpush2.msra.mxu0 %v48
  %144 = vmatprep.subr.mxu0 0.0
  %145 = vmatpush2.msra.mxu0 %v47
  %146 = vmatprep.subr.mxu0 0.0
  %147 = vmatpush2.msra.mxu0 %v46
  %148 = vmatprep.subr.mxu0 0.0
  %149 = vmatpush2.msra.mxu0 %v45
  %150 = vmatprep.subr.mxu0 0.0
  %151 = vmatpush2.msra.mxu0 %v44
  %152 = vmatprep.subr.mxu0 0.0
  %153 = vmatpush2.msra.mxu0 %v43
  %154 = vmatprep.subr.mxu0 0.0
  %155 = vmatpush2.msra.mxu0 %v42
  %156 = vmatprep.subr.mxu0 0.0
  %157 = vmatpush2.msra.mxu0 %v41
  %158 = vmatprep.subr.mxu0 0.0
  %159 = vmatpush2.msra.mxu0 %v40
  %160 = vmatprep.subr.mxu0 0.0
  %161 = vmatpush2.msra.mxu0 %v39
  %162 = vmatprep.subr.mxu0 0.0
  %163 = vmatpush2.msra.mxu0 %v38
  %164 = vmatprep.subr.mxu0 0.0
  %165 = vmatpush2.msra.mxu0 %v37
  %166 = vmatprep.subr.mxu0 0.0
  %167 = vmatpush2.msra.mxu0 %v36
  %168 = vmatprep.subr.mxu0 0.0
  %169 = vmatpush2.msra.mxu0 %v35
  %170 = vmatprep.mubr.f32.mxu0 %v15
  %171 = vmatmul.mubr.f32.gmra.mxu0 %v14
  %v172 = vpop.f32.mrf.mxu0
  %v173 = vadd.f32 %v104, %v172
  %v174 = vpop.f32.mrf.mxu0
  %175 = vdwg.mxu0
  %176 = vmatprep.subr.mxu0 0.0
  %177 = vmatpush1.msra.mxu0 %v66
  %178 = vmatprep.subr.mxu0 0.0
  %179 = vmatpush1.msra.mxu0 %v65
  %180 = vmatprep.subr.mxu0 0.0
  %181 = vmatpush1.msra.mxu0 %v64
  %182 = vmatprep.subr.mxu0 0.0
  %183 = vmatpush1.msra.mxu0 %v63
  %184 = vmatprep.subr.mxu0 0.0
  %185 = vmatpush1.msra.mxu0 %v62
  %186 = vmatprep.subr.mxu0 0.0
  %187 = vmatpush1.msra.mxu0 %v61
  %188 = vmatprep.subr.mxu0 0.0
  %189 = vmatpush1.msra.mxu0 %v60
  %190 = vmatprep.subr.mxu0 0.0
  %191 = vmatpush1.msra.mxu0 %v59
  %192 = vmatprep.subr.mxu0 0.0
  %193 = vmatpush1.msra.mxu0 %v58
  %194 = vmatprep.subr.mxu0 0.0
  %195 = vmatpush1.msra.mxu0 %v57
  %196 = vmatprep.subr.mxu0 0.0
  %197 = vmatpush1.msra.mxu0 %v56
  %198 = vmatprep.subr.mxu0 0.0
  %199 = vmatpush1.msra.mxu0 %v55
  %200 = vmatprep.subr.mxu0 0.0
  %201 = vmatpush1.msra.mxu0 %v54
  %202 = vmatprep.subr.mxu0 0.0
  %203 = vmatpush1.msra.mxu0 %v53
  %204 = vmatprep.subr.mxu0 0.0
  %205 = vmatpush1.msra.mxu0 %v52
  %206 = vmatprep.subr.mxu0 0.0
  %207 = vmatpush1.msra.mxu0 %v51
  %208 = vmatprep.subr.mxu0 0.0
  %209 = vmatpush2.msra.mxu0 %v82
  %210 = vmatprep.subr.mxu0 0.0
  %211 = vmatpush2.msra.mxu0 %v81
  %212 = vmatprep.subr.mxu0 0.0
  %213 = vmatpush2.msra.mxu0 %v80
  %214 = vmatprep.subr.mxu0 0.0
  %215 = vmatpush2.msra.mxu0 %v79
  %216 = vmatprep.subr.mxu0 0.0
  %217 = vmatpush2.msra.mxu0 %v78
  %218 = vmatprep.subr.mxu0 0.0
  %219 = vmatpush2.msra.mxu0 %v77
  %220 = vmatprep.subr.mxu0 0.0
  %221 = vmatpush2.msra.mxu0 %v76
  %222 = vmatprep.subr.mxu0 0.0
  %223 = vmatpush2.msra.mxu0 %v75
  %224 = vmatprep.subr.mxu0 0.0
  %225 = vmatpush2.msra.mxu0 %v74
  %226 = vmatprep.subr.mxu0 0.0
  %227 = vmatpush2.msra.mxu0 %v73
  %228 = vmatprep.subr.mxu0 0.0
  %229 = vmatpush2.msra.mxu0 %v72
  %230 = vmatprep.subr.mxu0 0.0
  %231 = vmatpush2.msra.mxu0 %v71
  %232 = vmatprep.subr.mxu0 0.0
  %233 = vmatpush2.msra.mxu0 %v70
  %234 = vmatprep.subr.mxu0 0.0
  %235 = vmatpush2.msra.mxu0 %v69
  %236 = vmatprep.subr.mxu0 0.0
  %237 = vmatpush2.msra.mxu0 %v68
  %238 = vmatprep.subr.mxu0 0.0
  %239 = vmatpush2.msra.mxu0 %v67
  %240 = vmatprep.mubr.f32.mxu0 %v17
  %241 = vmatmul.mubr.f32.gmra.mxu0 %v16
  %v242 = vpop.f32.mrf.mxu0
  %v243 = vadd.f32 %v173, %v242
  %v244 = vpop.f32.mrf.mxu0
  %245 = vdwg.mxu0
  %246 = vmatprep.subr.mxu0 0.0
  %247 = vmatpush1.msra.mxu0 %v98
  %248 = vmatprep.subr.mxu0 0.0
  %249 = vmatpush1.msra.mxu0 %v97
  %250 = vmatprep.subr.mxu0 0.0
  %251 = vmatpush1.msra.mxu0 %v96
  %252 = vmatprep.subr.mxu0 0.0
  %253 = vmatpush1.msra.mxu0 %v95
  %254 = vmatprep.subr.mxu0 0.0
  %255 = vmatpush1.msra.mxu0 %v94
  %256 = vmatprep.subr.mxu0 0.0
  %257 = vmatpush1.msra.mxu0 %v93
  %258 = vmatprep.subr.mxu0 0.0
  %259 = vmatpush1.msra.mxu0 %v92
  %260 = vmatprep.subr.mxu0 0.0
  %261 = vmatpush1.msra.mxu0 %v91
  %262 = vmatprep.subr.mxu0 0.0
  %263 = vmatpush1.msra.mxu0 %v90
  %264 = vmatprep.subr.mxu0 0.0
  %265 = vmatpush1.msra.mxu0 %v89
  %266 = vmatprep.subr.mxu0 0.0
  %267 = vmatpush1.msra.mxu0 %v88
  %268 = vmatprep.subr.mxu0 0.0
  %269 = vmatpush1.msra.mxu0 %v87
  %270 = vmatprep.subr.mxu0 0.0
  %271 = vmatpush1.msra.mxu0 %v86
  %272 = vmatprep.subr.mxu0 0.0
  %273 = vmatpush1.msra.mxu0 %v85
  %274 = vmatprep.subr.mxu0 0.0
  %275 = vmatpush1.msra.mxu0 %v84
  %276 = vmatprep.subr.mxu0 0.0
  %277 = vmatpush1.msra.mxu0 %v83
  %278 = vmatprep.subr.mxu0 0.0
  %279 = vmatpush2.msra.mxu0 0.0
  %280 = vmatprep.subr.mxu0 0.0
  %281 = vmatpush2.msra.mxu0 0.0
  %282 = vmatprep.subr.mxu0 0.0
  %283 = vmatpush2.msra.mxu0 0.0
  %284 = vmatprep.subr.mxu0 0.0
  %285 = vmatpush2.msra.mxu0 0.0
  %286 = vmatprep.subr.mxu0 0.0
  %287 = vmatpush2.msra.mxu0 0.0
  %288 = vmatprep.subr.mxu0 0.0
  %289 = vmatpush2.msra.mxu0 0.0
  %290 = vmatprep.subr.mxu0 0.0
  %291 = vmatpush2.msra.mxu0 0.0
  %292 = vmatprep.subr.mxu0 0.0
  %293 = vmatpush2.msra.mxu0 0.0
  %294 = vmatprep.subr.mxu0 0.0
  %295 = vmatpush2.msra.mxu0 0.0
  %296 = vmatprep.subr.mxu0 0.0
  %297 = vmatpush2.msra.mxu0 0.0
  %298 = vmatprep.subr.mxu0 0.0
  %299 = vmatpush2.msra.mxu0 0.0
  %300 = vmatprep.subr.mxu0 0.0
  %301 = vmatpush2.msra.mxu0 0.0
  %302 = vmatprep.subr.mxu0 0.0
  %303 = vmatpush2.msra.mxu0 0.0
  %304 = vmatprep.subr.mxu0 0.0
  %305 = vmatpush2.msra.mxu0 0.0
  %306 = vmatprep.subr.mxu0 0.0
  %307 = vmatpush2.msra.mxu0 0.0
  %308 = vmatprep.subr.mxu0 0.0
  %309 = vmatpush2.msra.mxu0 0.0
  %310 = vmatprep.mubr.f32.mxu0 0.0
  %311 = vmatmul.mubr.f32.gmra.mxu0 %v18
  %v312 = vpop.f32.mrf.mxu0
  %v313 = vadd.f32 %v243, %v312
  %v314 = vpop.f32.mrf.mxu0
  %315 = vdwg.mxu0
  %316 = vst [vmem:[%s3] sm:$0xff] %v313
  // Predicated region
  $region14: #{_forward_impl.5} parent=0 // pred_check
    _
  $region15: #{_forward_impl.5} parent=0 // pred_check_branch
    %318 = sbr.rel (0) target = $region17
  $region16: #{_forward_impl.5} parent=0 // pred_region
    _
  $region17: #{_forward_impl.5} parent=0 // pred_fallthru
    _
  // Predicated region
  $region18: #{_forward_impl.5} parent=0 // pred_check
    _
  $region19: #{_forward_impl.5} parent=0 // pred_check_branch
    %320 = sbr.rel (0) target = $region21
  $region20: #{_forward_impl.5} parent=0 // pred_region
    _
  $region21: #{_forward_impl.5} parent=0 // pred_fallthru
    _

</llo_original>
